<compile_context>
chip_gen: v6e
topology: v6e:2x2x1
jax: 0.10.0
libtpu: 0.0.40
codegen_flags: <defaults>
</compile_context>

<pallas_src>
import jax
import jax.numpy as jnp
from jax.experimental import pallas as pl
from jax.experimental.pallas import tpu as pltpu


def _round_up(x, m):
    return ((x + m - 1) // m) * m


def _vmem_budget_bytes():
    """0.75 * per-TensorCore VMEM capacity, with a conservative fallback."""
    cap = None
    try:
        cap = int(pltpu.get_tpu_info().vmem_capacity_bytes)
    except Exception:
        cap = None
    if not cap or cap <= 0:
        cap = 64 * 1024 * 1024  # conservative: v7x per-TC VMEM
    return (cap * 3) // 4


def _num_tensorcores():
    """Best-effort TensorCore count of the local part; default 1 (no forced split)."""
    try:
        info = pltpu.get_tpu_info()
        for name in ("num_cores", "num_tensorcores", "tensorcores_per_chip",
                     "cores_per_chip"):
            v = getattr(info, name, None)
            if isinstance(v, int) and v > 0:
                return v
    except Exception:
        pass
    try:
        v = getattr(jax.devices()[0], "num_cores", None)
        if isinstance(v, int) and v > 0:
            return v
    except Exception:
        pass
    return 1


def _block_spec(shape, index_map, *, single_buffer=False):
    if single_buffer:
        try:
            # Constant index_map -> no re-DMA; one buffer saves resident VMEM.
            return pl.BlockSpec(shape, index_map, pipeline_mode=pl.Buffered(1))
        except TypeError:
            pass  # older BlockSpec signature without pipeline_mode
    return pl.BlockSpec(shape, index_map)


def _pca_kernel(x_ref, mt_ref, bias_ref, o_ref):
    # x_ref:    (tm, k)   row tile of the input
    # mt_ref:   (k, tn)   column slab of PCA_mul[0].T
    # bias_ref: (1, tn)   -(mean @ mt) column slab, float32
    # o_ref:    (tm, tn)  output tile
    acc = jnp.dot(x_ref[...], mt_ref[...], preferred_element_type=jnp.float32)
    o_ref[...] = (acc + bias_ref[...]).astype(o_ref.dtype)


def pca_prepare(mean, pca_mul, *, weights_dtype=None):
    """One-time weight prep (hoist out of the per-call path, or jit-constant-fold).

    out = (x - mean) @ PCA_mul[0].T  ==  x @ mt + bias,  bias = -(mean @ mt).
    Optionally cast mt to bf16 (weights_dtype) for the large-k compute-bound regime.
    """
    k = mean.shape[0]
    assert pca_mul.shape == (1, k, k)
    mt = jnp.transpose(pca_mul[0])                                   # (k, k)
    bias = -jnp.dot(mean.reshape(1, k).astype(jnp.float32),
                    mt.astype(jnp.float32))                          # (1, k) f32
    if weights_dtype is not None:
        mt = mt.astype(weights_dtype)
    return mt, bias


def pca_apply(x, mt, bias, *, tm=None):
    """Tiled TPU GEMM+bias: out = x @ mt + bias. x: (N,k) or (b,s,k)."""
    reshape = False
    if x.ndim == 3:
        b, s, _ = x.shape
        x = x.reshape(b * s, x.shape[-1])
        reshape = True
    N, k = x.shape
    assert mt.shape == (k, k)
    assert bias.shape == (1, k)

    # Enforce the MXU input dtype explicitly: if x is a narrower float (e.g. bf16),
    # cast the weights down so the fast MXU path is used; accumulation stays f32.
    if (jnp.issubdtype(x.dtype, jnp.floating)
            and jnp.dtype(x.dtype).itemsize < jnp.dtype(mt.dtype).itemsize):
        mt = mt.astype(x.dtype)

    xb = jnp.dtype(x.dtype).itemsize
    wb = jnp.dtype(mt.dtype).itemsize
    ob = xb
    sublane = max(8, 32 // xb)          # 8 for f32, 16 for bf16, 32 for int8/fp8

    budget = _vmem_budget_bytes()

    # ---- column tiling of the weight matrix / bias / output -----------------
    mt_resident = k * k * wb
    if mt_resident <= budget // 2:
        tn, n_col = k, 1
        # Single-buffer the constant-index weights only when it actually matters
        # (keeps the proven small-k path unchanged).
        single_buffer_w = mt_resident > (4 << 20)
        w_bufs = 1 if single_buffer_w else 2
    else:
        # TODO(synk): for k so large that even a (k, 128) slab blows the budget, an
        # "arbitrary" contraction-K grid axis with an f32 acc scratch is needed.
        tn = ((budget // 2) // (2 * k * wb)) // 128 * 128
        tn = int(max(128, min(tn, _round_up(k, 128))))
        n_col = pl.cdiv(k, tn)
        single_buffer_w = False
        w_bufs = 2

    # ---- row tile sizing: target ~4 MiB of in+out DMA per grid step ---------
    w_bytes = w_bufs * (k * tn * wb + tn * 4)
    row_bytes = 2 * (k * xb + tn * ob)                 # double-buffered x-in + out
    avail = budget - w_bytes - (2 << 20)               # headroom for internal scratch
    tm_cap = max(sublane, avail // max(row_bytes, 1))
    tm_dma = max(sublane, (4 << 20) // max(k * xb + tn * ob, 1))
    tm_eff = min(tm if tm is not None else tm_dma, tm_cap, _round_up(N, sublane))
    tm_eff = max(sublane, (tm_eff // sublane) * sublane)

    # ---- megacore: only split / balance when the part really has >= 2 TCs ---
    cores = _num_tensorcores()
    n_row = pl.cdiv(N, tm_eff)
    if cores >= 2 and N >= cores * sublane:
        if n_row < cores:
            tm_eff = max(sublane, _round_up(pl.cdiv(N, cores), sublane))
        elif n_row % cores != 0:
            cand = max(sublane,
                       _round_up(pl.cdiv(N, _round_up(n_row, cores)), sublane))
            if pl.cdiv(N, cand) % cores == 0:
                tm_eff = cand
        n_row = pl.cdiv(N, tm_eff)

    need = w_bytes + 2 * tm_eff * (k * xb + tn * ob)
    vmem_limit = int(min(budget, max(need + (4 << 20), 32 << 20)))

    cost = pl.CostEstimate(
        flops=2 * N * k * k,
        transcendentals=0,
        bytes_accessed=N * k * xb + N * k * ob + k * k * wb + k * 4,
    )

    out = pl.pallas_call(
        _pca_kernel,
        out_shape=jax.ShapeDtypeStruct((N, k), x.dtype),
        grid_spec=pltpu.PrefetchScalarGridSpec(
            num_scalar_prefetch=0,
            grid=(n_row, n_col),
            in_specs=[
                pl.BlockSpec((tm_eff, k), lambda i, j: (i, 0)),        # x row tile
                _block_spec((k, tn), lambda i, j: (0, j),
                            single_buffer=single_buffer_w),            # weights slab
                _block_spec((1, tn), lambda i, j: (0, j),
                            single_buffer=single_buffer_w),            # bias slab
            ],
            out_specs=pl.BlockSpec((tm_eff, tn), lambda i, j: (i, j)),
        ),
        compiler_params=pltpu.CompilerParams(
            dimension_semantics=("parallel", "parallel"),
            vmem_limit_bytes=vmem_limit,
        ),
        cost_estimate=cost,
    )(x, mt, bias)

    if reshape:
        out = out.reshape(b, s, k)
    return out


def pca_forward(x, mean, pca_mul, *, tm=None, weights_dtype=None):
    """Convenience wrapper matching PCA.forward. For repeated calls with fixed
    weights, call pca_prepare() once and reuse (mt, bias) with pca_apply()."""
    mt, bias = pca_prepare(mean, pca_mul, weights_dtype=weights_dtype)
    return pca_apply(x, mt, bias, tm=tm)


if __name__ == "__main__":
    # TODO(synk): build()/update() (statistics accumulation + torch.symeig) are
    # offline setup; only the forward projection (the hot path) is a Pallas kernel.
    key = jax.random.PRNGKey(0)
    k_feat = 32
    b, s = 2, 8

    kx, km, kpm = jax.random.split(key, 3)
    x = jax.random.normal(kx, (b, s, k_feat), dtype=jnp.float32)
    mean = jax.random.normal(km, (k_feat,), dtype=jnp.float32)
    pca_mul = jax.random.normal(kpm, (1, k_feat, k_feat), dtype=jnp.float32)

    out = pca_forward(x, mean, pca_mul)
    out = jax.block_until_ready(out)

    # Reference check (plain JAX) of the exact PyTorch broadcasting semantics.
    xf = x.reshape(b * s, k_feat) - mean
    ref = (pca_mul * xf[:, None, :]).sum(axis=2).reshape(b, s, k_feat)
    assert out.shape == (b, s, k_feat)
    assert jnp.allclose(out, ref, atol=1e-4, rtol=1e-4)

    print("KERNEL_OK")
</pallas_src>

<mosaic_0001>
module attributes {stable_mosaic.version = 11 : i64} {
  func.func @_pca_kernel(%arg0: i32, %arg1: i32, %arg2: memref<16x32xf32, #tpu.memory_space<vmem>>, %arg3: memref<32x32xf32, #tpu.memory_space<vmem>>, %arg4: memref<1x32xf32, #tpu.memory_space<vmem>>, %arg5: memref<16x32xf32, #tpu.memory_space<vmem>>) attributes {dimension_semantics = [#tpu.dimension_semantics<parallel>, #tpu.dimension_semantics<parallel>], iteration_bounds = array<i64: 1, 1>, scalar_prefetch = 0 : i64, scratch_operands = 0 : i64, tpu.core_type = #tpu.core_type<tc>, window_params = [{transform_indices = @transform_0, window_bounds = array<i64: 16, 32>}, {transform_indices = @transform_1, window_bounds = array<i64: 32, 32>}, {transform_indices = @transform_2, window_bounds = array<i64: 1, 32>}, {transform_indices = @transform_3, window_bounds = array<i64: 16, 32>}]} {
    %c0 = arith.constant 0 : index
    %c0_0 = arith.constant 0 : index
    %0 = vector.load %arg2[%c0, %c0_0] : memref<16x32xf32, #tpu.memory_space<vmem>>, vector<16x32xf32>
    %c0_1 = arith.constant 0 : index
    %c0_2 = arith.constant 0 : index
    %1 = vector.load %arg3[%c0_1, %c0_2] : memref<32x32xf32, #tpu.memory_space<vmem>>, vector<32x32xf32>
    %cst = arith.constant dense<0.000000e+00> : vector<16x32xf32>
    %2 = tpu.matmul %0, %1, %cst {dimension_numbers = #tpu.dot_dimension_numbers<[1], [0], [0], [1], [0, 0, 1, 1], [], []>} : vector<16x32xf32>, vector<32x32xf32>, vector<16x32xf32> -> vector<16x32xf32>
    %c0_3 = arith.constant 0 : index
    %c0_4 = arith.constant 0 : index
    %3 = vector.load %arg4[%c0_3, %c0_4] : memref<1x32xf32, #tpu.memory_space<vmem>>, vector<1x32xf32>
    %4 = vector.broadcast %3 : vector<1x32xf32> to vector<16x32xf32>
    %5 = arith.addf %2, %4 : vector<16x32xf32>
    %c0_5 = arith.constant 0 : index
    %c0_6 = arith.constant 0 : index
    %6 = vector.load %arg5[%c0_5, %c0_6] : memref<16x32xf32, #tpu.memory_space<vmem>>, vector<16x32xf32>
    tpu.vector_store %arg5[%c0_5, %c0_6], %5 {strides = array<i32>} : memref<16x32xf32, #tpu.memory_space<vmem>>, vector<16x32xf32>,
    return
  }
  func.func @transform_0(%arg0: i32, %arg1: i32) -> (i32, i32) {
    %c0_i32 = arith.constant 0 : i32
    %c0_i32_0 = arith.constant 0 : i32
    return %arg0, %c0_i32 : i32, i32
  }
  func.func @transform_1(%arg0: i32, %arg1: i32) -> (i32, i32) {
    %c0_i32 = arith.constant 0 : i32
    %c0_i32_0 = arith.constant 0 : i32
    return %c0_i32, %arg1 : i32, i32
  }
  func.func @transform_2(%arg0: i32, %arg1: i32) -> (i32, i32) {
    %c0_i32 = arith.constant 0 : i32
    %c0_i32_0 = arith.constant 0 : i32
    return %c0_i32, %arg1 : i32, i32
  }
  func.func @transform_3(%arg0: i32, %arg1: i32) -> (i32, i32) {
    %c0_i32 = arith.constant 0 : i32
    return %arg0, %arg1 : i32, i32
  }
}

</mosaic_0001>

<llo_original>
// kernel: tpu_custom_call.1
$region0: #{tpu_custom_call.1}
  #allocation0 [shape = 'u32[]', space=smem, size = 0x4, offset = 0x4, fixed_abs, tag = 'smem constant byte address 0x4 - core index']
  #allocation1 [shape = 'u32[144,128]{1,0:T(1,128)}', space=vmem, size = 0x12000, scoped, tag = 'internal scratch']
  %s0 = inlined_call_operand.hbm [shape: f32[16,32], index: 0, kind: input, shape index: {}]
  %s1 = inlined_call_operand.hbm [shape: f32[32,32], index: 1, kind: input, shape index: {}]
  %s2 = inlined_call_operand.vmem [shape: f32[1,32], index: 2, kind: input, shape index: {}]
  %s3 = inlined_call_operand.hbm [shape: f32[16,32], index: 3, kind: output, shape index: {}]
  %s4 = sld [smem:[#allocation0]]
  $region30: #{tpu_custom_call.1} parent=0
    _
  %s6 = ssub.s32 1, %s4
  %s7 = scalar_select 0, %s6, %s4
  $region1: #{tpu_custom_call.1} parent=0
    #allocation2 [shape = 'u8[8192]{0}', space=vmem, size = 0x2000, scoped, tag = 'input window, operand 0, single buffered']
    #allocation3 [shape = 's32[1]{0}', space=sflag, size = 0x4, scoped, tag = 'scoped memory for tpu_custom_call.1']
    #allocation4 [shape = 's32[1]{0}', space=sflag, size = 0x4, scoped, tag = 'scoped memory for tpu_custom_call.1']
    #allocation5 [shape = 'u8[16384]{0}', space=vmem, size = 0x4000, scoped, tag = 'input window, operand 1, single buffered']
    #allocation6 [shape = 's32[1]{0}', space=sflag, size = 0x4, scoped, tag = 'scoped memory for tpu_custom_call.1']
    #allocation7 [shape = 'u8[8192]{0}', space=vmem, size = 0x2000, scoped, tag = 'output window, operand 0, single buffered']
    %8 = vsyncpa [#allocation3], 0
    %9 = vsyncpa [#allocation6], 0
    %10 = vsyncpa [#allocation4], 0
    // Predicated region
    $region2: #{tpu_custom_call.1} parent=1 // pred_check
      _
    $region3: #{tpu_custom_call.1} parent=1 // pred_check_branch
      %12 = sbr.rel (0) target = $region5
    $region4: #{tpu_custom_call.1} parent=1 // pred_region
      %s14 = ssub.s32 256, 256
      %15 = vsyncadd [#allocation3], %s14
      %s16 = sshll.u32 [#allocation2], 4
      %s17 = int_to_ptr.vmem [resolvable:$true] %s16
      %22 = dma.hbm_to_vmem [thread:$0]  %s0, 256, %s17, [#allocation3], 128, 128, 8
    $region5: #{tpu_custom_call.1} parent=1 // pred_fallthru
      _
    // Predicated region
    $region6: #{tpu_custom_call.1} parent=1 // pred_check
      _
    $region7: #{tpu_custom_call.1} parent=1 // pred_check_branch
      %24 = sbr.rel (0) target = $region9
    $region8: #{tpu_custom_call.1} parent=1 // pred_region
      %s26 = ssub.s32 512, 512
      %27 = vsyncadd [#allocation6], %s26
      %s28 = sshll.u32 [#allocation5], 4
      %s29 = int_to_ptr.vmem [resolvable:$true] %s28
      %34 = dma.hbm_to_vmem [thread:$0]  %s1, 512, %s29, [#allocation6], 128, 128, 8
    $region9: #{tpu_custom_call.1} parent=1 // pred_fallthru
      _
    // Predicated region
    $region10: #{tpu_custom_call.1} parent=1 // pred_check
      _
    $region11: #{tpu_custom_call.1} parent=1 // pred_check_branch
      %36 = sbr.rel (0) target = $region13
    $region12: #{tpu_custom_call.1} parent=1 // pred_region
      _
    $region13: #{tpu_custom_call.1} parent=1 // pred_fallthru
      _
    // Predicated region
    $region14: #{tpu_custom_call.1} parent=1 // pred_check
      _
    $region15: #{tpu_custom_call.1} parent=1 // pred_check_branch
      %38 = sbr.rel (0) target = $region17
    $region16: #{tpu_custom_call.1} parent=1 // pred_region
      %39 = dma.done [#allocation3], 256
    $region17: #{tpu_custom_call.1} parent=1 // pred_fallthru
      _
    // Predicated region
    $region18: #{tpu_custom_call.1} parent=1 // pred_check
      _
    $region19: #{tpu_custom_call.1} parent=1 // pred_check_branch
      %41 = sbr.rel (0) target = $region21
    $region20: #{tpu_custom_call.1} parent=1 // pred_region
      %42 = dma.done [#allocation6], 512
    $region21: #{tpu_custom_call.1} parent=1 // pred_fallthru
      _
    %v43 = vld [vmem:[#allocation2] sm:$0xff]
    %v44 = vld [vmem:[#allocation2 + $0x8] sm:$0xff]
    %v45 = vld [vmem:[#allocation5] sm:$0xff]
    %v46 = vld [vmem:[#allocation5 + $0x8] sm:$0xff]
    %v47 = vld [vmem:[#allocation5 + $0x10] sm:$0xff]
    %v48 = vld [vmem:[#allocation5 + $0x18] sm:$0xff]
    %v49 = vld [vmem:[%s2] sm:$0x1]
    %v51 = vlaneseq
    %v52 = vshrl.u32 %v51, 7
    %v53 = vsub.s32 0, %v52
    %v54 = vrot.slane %v49, %v53
    %vm56 = vcmask 261120
    %v58 = vsel %vm56, %v43, 0
    %v61 = vsel %vm56, %v44, 0
    %63 = vmatprep.subr.mxu0 0.0
    %64 = vmatpush1.msra.mxu0 0.0
    %65 = vmatprep.subr.mxu0 0.0
    %66 = vmatpush1.msra.mxu0 0.0
    %67 = vmatprep.subr.mxu0 0.0
    %68 = vmatpush1.msra.mxu0 0.0
    %69 = vmatprep.subr.mxu0 0.0
    %70 = vmatpush1.msra.mxu0 0.0
    %71 = vmatprep.subr.mxu0 0.0
    %72 = vmatpush1.msra.mxu0 0.0
    %73 = vmatprep.subr.mxu0 0.0
    %74 = vmatpush1.msra.mxu0 0.0
    %75 = vmatprep.subr.mxu0 0.0
    %76 = vmatpush1.msra.mxu0 0.0
    %77 = vmatprep.subr.mxu0 0.0
    %78 = vmatpush1.msra.mxu0 0.0
    %79 = vmatprep.subr.mxu0 0.0
    %80 = vmatpush1.msra.mxu0 0.0
    %81 = vmatprep.subr.mxu0 0.0
    %82 = vmatpush1.msra.mxu0 0.0
    %83 = vmatprep.subr.mxu0 0.0
    %84 = vmatpush1.msra.mxu0 0.0
    %85 = vmatprep.subr.mxu0 0.0
    %86 = vmatpush1.msra.mxu0 0.0
    %87 = vmatprep.subr.mxu0 0.0
    %88 = vmatpush1.msra.mxu0 %v48
    %89 = vmatprep.subr.mxu0 0.0
    %90 = vmatpush1.msra.mxu0 %v47
    %91 = vmatprep.subr.mxu0 0.0
    %92 = vmatpush1.msra.mxu0 %v46
    %93 = vmatprep.subr.mxu0 0.0
    %94 = vmatpush1.msra.mxu0 %v45
    %95 = vmatprep.subr.mxu0 0.0
    %96 = vmatpush2.msra.mxu0 0.0
    %97 = vmatprep.subr.mxu0 0.0
    %98 = vmatpush2.msra.mxu0 0.0
    %99 = vmatprep.subr.mxu0 0.0
    %100 = vmatpush2.msra.mxu0 0.0
    %101 = vmatprep.subr.mxu0 0.0
    %102 = vmatpush2.msra.mxu0 0.0
    %103 = vmatprep.subr.mxu0 0.0
    %104 = vmatpush2.msra.mxu0 0.0
    %105 = vmatprep.subr.mxu0 0.0
    %106 = vmatpush2.msra.mxu0 0.0
    %107 = vmatprep.subr.mxu0 0.0
    %108 = vmatpush2.msra.mxu0 0.0
    %109 = vmatprep.subr.mxu0 0.0
    %110 = vmatpush2.msra.mxu0 0.0
    %111 = vmatprep.subr.mxu0 0.0
    %112 = vmatpush2.msra.mxu0 0.0
    %113 = vmatprep.subr.mxu0 0.0
    %114 = vmatpush2.msra.mxu0 0.0
    %115 = vmatprep.subr.mxu0 0.0
    %116 = vmatpush2.msra.mxu0 0.0
    %117 = vmatprep.subr.mxu0 0.0
    %118 = vmatpush2.msra.mxu0 0.0
    %119 = vmatprep.subr.mxu0 0.0
    %120 = vmatpush2.msra.mxu0 0.0
    %121 = vmatprep.subr.mxu0 0.0
    %122 = vmatpush2.msra.mxu0 0.0
    %123 = vmatprep.subr.mxu0 0.0
    %124 = vmatpush2.msra.mxu0 0.0
    %125 = vmatprep.subr.mxu0 0.0
    %126 = vmatpush2.msra.mxu0 0.0
    %127 = vmatprep.mubr.f32.mxu0 0.0
    %128 = vmatmul.mubr.f32.gmra.mxu0 %v58
    %v129 = vpop.f32.mrf.mxu0
    %v130 = vadd.f32 %v54, %v129
    %v131 = vpop.f32.mrf.mxu0
    %132 = vmatprep.mubr.f32.mxu0 0.0
    %133 = vmatmul.mubr.f32.gmra.mxu0 %v61
    %v134 = vpop.f32.mrf.mxu0
    %v135 = vadd.f32 %v54, %v134
    %v136 = vpop.f32.mrf.mxu0
    %137 = vdwg.mxu0
    %138 = vst.msk [vmem:[#allocation7] sm:$0xff] %vm56, %v130
    %139 = vst.msk [vmem:[#allocation7 + $0x8] sm:$0xff] %vm56, %v135
    // Predicated region
    $region22: #{tpu_custom_call.1} parent=1 // pred_check
      _
    $region23: #{tpu_custom_call.1} parent=1 // pred_check_branch
      %141 = sbr.rel (0) target = $region25
    $region24: #{tpu_custom_call.1} parent=1 // pred_region
      %s143 = ssub.s32 256, 256
      %144 = vsyncadd [#allocation4], %s143
      %s145 = sshll.u32 [#allocation7], 4
      %s146 = int_to_ptr.vmem [resolvable:$true] %s145
      %151 = dma.vmem_to_hbm [thread:$0]  %s146, 256, %s3, [#allocation4], 128, 128, 8
    $region25: #{tpu_custom_call.1} parent=1 // pred_fallthru
      _
    // Predicated region
    $region26: #{tpu_custom_call.1} parent=1 // pred_check
      _
    $region27: #{tpu_custom_call.1} parent=1 // pred_check_branch
      %153 = sbr.rel (0) target = $region29
    $region28: #{tpu_custom_call.1} parent=1 // pred_region
      %154 = dma.done [#allocation4], 256
    $region29: #{tpu_custom_call.1} parent=1 // pred_fallthru
      _
    %155 = vsyncpa [#allocation3], 1
    %156 = vsyncpa [#allocation6], 1
    %157 = vsyncpa [#allocation4], 1

</llo_original>
